<compile_context>
chip_gen: v5e
topology: v5e:2x2
jax: 0.10.0
libtpu: 0.0.40
codegen_flags: <defaults>
</compile_context>

<pallas_src>
import functools

import numpy as np
import jax
import jax.numpy as jnp
from jax.experimental import pallas as pl
from jax.experimental.pallas import tpu as pltpu


def _hanning_taps(filter_size=5):
    # Mirrors L2pooling.__init__: hanning window (edges dropped) outer product,
    # normalized. Same for every channel, so return plain Python floats.
    a = np.hanning(filter_size)[1:-1]
    g = a[:, None] * a[None, :]
    g = g / g.sum()
    return tuple(tuple(float(v) for v in row) for row in g)


def _l2pool_kernel(x_ref, o_ref, pad_ref, *, taps, stride, padding, eps):
    # x_ref:   (H, W, C)      channels-last input slab for this (batch, C-block)
    # o_ref:   (Ho, Wo, C)    channels-last output slab
    # pad_ref: (H+2p, W+2p, C) VMEM scratch holding zero-padded x**2
    H, W, C = x_ref.shape
    Ho, Wo, _ = o_ref.shape
    Hp, Wp, _ = pad_ref.shape
    k = len(taps)

    x = x_ref[...].astype(jnp.float32)

    # Zero only the halo border every step (scratch is not guaranteed to be
    # zero-initialized and is per-core under megacore sharding), then write
    # x**2 into the interior. 0**2 == 0, so this matches F.conv2d zero padding.
    if padding:
        zrow = jnp.zeros((padding, Wp, C), jnp.float32)
        zcol = jnp.zeros((Hp, padding, C), jnp.float32)
        pad_ref[0:padding, :, :] = zrow
        pad_ref[Hp - padding:Hp, :, :] = zrow
        pad_ref[:, 0:padding, :] = zcol
        pad_ref[:, Wp - padding:Wp, :] = zcol
    pad_ref[padding:padding + H, padding:padding + W, :] = x * x

    # Depthwise conv at stride `stride`: accumulate only the needed output
    # positions with strided VMEM reads (k*k shifted slabs, VPU MACs).
    # Channels stay on lanes, so every tap is a full-lane vector op.
    acc = jnp.zeros((Ho, Wo, C), jnp.float32)
    for ki in range(k):
        for kj in range(k):
            acc = acc + taps[ki][kj] * pad_ref[
                pl.ds(ki, Ho, stride), pl.ds(kj, Wo, stride), :]

    o_ref[...] = jnp.sqrt(acc + eps).astype(o_ref.dtype)


def l2pooling(x, *, filter_size=5, stride=2):
    """Forward of L2pooling. x is NCHW; returns NCHW (matches the module)."""
    B, C, H, W = x.shape
    taps = _hanning_taps(filter_size)
    k = filter_size - 2                      # = 3
    padding = (filter_size - 2) // 2         # = 1 (pad_off in the module is unused)
    Hp, Wp = H + 2 * padding, W + 2 * padding
    Ho = (Hp - k) // stride + 1
    Wo = (Wp - k) // stride + 1

    # Channel block: full C if small, otherwise 128-lane slabs.
    cblk = C if C <= 128 else 128
    assert C % cblk == 0, "channel count must be a multiple of the channel block"

    # Channels-last so channels map to the lane axis (lane-dense loads/stores).
    xt = jnp.transpose(x, (0, 2, 3, 1))      # (B, H, W, C)

    kernel = functools.partial(_l2pool_kernel, taps=taps, stride=stride,
                               padding=padding, eps=1e-12)

    # Raise the scoped-VMEM limit only when the blocks actually need it; cap at
    # 48 MiB so it also fits v7x's 64 MiB physical VMEM.
    est_bytes = 4 * cblk * (2 * H * W + 2 * Ho * Wo + Hp * Wp)
    cp_kwargs = dict(dimension_semantics=("parallel", "parallel"))
    if est_bytes > 16 * 1024 * 1024:
        cp_kwargs["vmem_limit_bytes"] = int(min(2 * est_bytes, 48 * 1024 * 1024))

    out_nhwc = pl.pallas_call(
        kernel,
        out_shape=jax.ShapeDtypeStruct((B, Ho, Wo, C), x.dtype),
        grid=(B, C // cblk),
        in_specs=[pl.BlockSpec((None, H, W, cblk), lambda b, c: (b, 0, 0, c))],
        out_specs=pl.BlockSpec((None, Ho, Wo, cblk), lambda b, c: (b, 0, 0, c)),
        scratch_shapes=[pltpu.VMEM((Hp, Wp, cblk), jnp.float32)],
        compiler_params=pltpu.CompilerParams(**cp_kwargs),
    )(xt)

    return jnp.transpose(out_nhwc, (0, 3, 1, 2))   # back to NCHW


def make_l2pool_filter(channels, filter_size=5):
    # Same buffer the PyTorch module registers: (C, 1, k, k), k = filter_size - 2.
    a = np.hanning(filter_size)[1:-1]
    g = a[:, None] * a[None, :]
    g = g / g.sum()
    return jnp.asarray(np.tile(g[None, None, :, :], (channels, 1, 1, 1)),
                       dtype=jnp.float32)


def l2pooling_ref(x, filt, *, stride=2, padding=1):
    # Pure-JAX reference (mirrors F.conv2d with groups=C).
    out = jax.lax.conv_general_dilated(
        x * x, filt, window_strides=(stride, stride),
        padding=[(padding, padding), (padding, padding)],
        dimension_numbers=("NCHW", "OIHW", "NCHW"),
        feature_group_count=x.shape[1])
    return jnp.sqrt(out + 1e-12)


if __name__ == "__main__":
    key = jax.random.PRNGKey(0)
    B, C, H, W = 2, 4, 16, 16
    x = jax.random.normal(key, (B, C, H, W), dtype=jnp.float32)

    out = jax.block_until_ready(l2pooling(x))

    filt = make_l2pool_filter(C, filter_size=5)
    ref = l2pooling_ref(x, filt, stride=2, padding=1)
    assert out.shape == ref.shape == (B, C, H // 2, W // 2)
    np.testing.assert_allclose(np.asarray(out), np.asarray(ref),
                               rtol=1e-4, atol=1e-5)

    print("KERNEL_OK")
</pallas_src>

<mosaic_0001>
module attributes {stable_mosaic.version = 11 : i64} {
  func.func @_l2pool_kernel(%arg0: i32, %arg1: i32, %arg2: memref<1x16x16x4xf32, #tpu.memory_space<vmem>>, %arg3: memref<1x8x8x4xf32, #tpu.memory_space<vmem>>, %arg4: memref<18x18x4xf32, #tpu.memory_space<vmem>>) attributes {dimension_semantics = [#tpu.dimension_semantics<parallel>, #tpu.dimension_semantics<parallel>], iteration_bounds = array<i64: 2, 1>, scalar_prefetch = 0 : i64, scratch_operands = 1 : i64, tpu.core_type = #tpu.core_type<tc>, window_params = [{transform_indices = @transform_0, window_bounds = array<i64: 1, 16, 16, 4>}, {transform_indices = @transform_1, window_bounds = array<i64: 1, 8, 8, 4>}]} {
    %c0 = arith.constant 0 : index
    %c0_0 = arith.constant 0 : index
    %c0_1 = arith.constant 0 : index
    %c0_2 = arith.constant 0 : index
    %0 = vector.load %arg2[%c0, %c0_0, %c0_1, %c0_2] : memref<1x16x16x4xf32, #tpu.memory_space<vmem>>, vector<1x16x16x4xf32>
    %1 = vector.shape_cast %0 : vector<1x16x16x4xf32> to vector<16x16x4xf32>
    %cst = arith.constant 0.000000e+00 : f32
    %2 = vector.broadcast %cst : f32 to vector<1x18x4xf32>
    %cst_3 = arith.constant 0.000000e+00 : f32
    %3 = vector.broadcast %cst_3 : f32 to vector<18x1x4xf32>
    %c0_4 = arith.constant 0 : index
    %c0_5 = arith.constant 0 : index
    %c0_6 = arith.constant 0 : index
    %4 = vector.load %arg4[%c0_4, %c0_5, %c0_6] : memref<18x18x4xf32, #tpu.memory_space<vmem>>, vector<1x18x4xf32>
    tpu.vector_store %arg4[%c0_4, %c0_5, %c0_6], %2 {strides = array<i32>} : memref<18x18x4xf32, #tpu.memory_space<vmem>>, vector<1x18x4xf32>,
    %c17 = arith.constant 17 : index
    %c0_7 = arith.constant 0 : index
    %c0_8 = arith.constant 0 : index
    %5 = vector.load %arg4[%c17, %c0_7, %c0_8] : memref<18x18x4xf32, #tpu.memory_space<vmem>>, vector<1x18x4xf32>
    tpu.vector_store %arg4[%c17, %c0_7, %c0_8], %2 {strides = array<i32>} : memref<18x18x4xf32, #tpu.memory_space<vmem>>, vector<1x18x4xf32>,
    %c0_9 = arith.constant 0 : index
    %c0_10 = arith.constant 0 : index
    %c0_11 = arith.constant 0 : index
    %6 = vector.load %arg4[%c0_9, %c0_10, %c0_11] : memref<18x18x4xf32, #tpu.memory_space<vmem>>, vector<18x1x4xf32>
    tpu.vector_store %arg4[%c0_9, %c0_10, %c0_11], %3 {strides = array<i32>} : memref<18x18x4xf32, #tpu.memory_space<vmem>>, vector<18x1x4xf32>,
    %c0_12 = arith.constant 0 : index
    %c17_13 = arith.constant 17 : index
    %c0_14 = arith.constant 0 : index
    %7 = vector.load %arg4[%c0_12, %c17_13, %c0_14] : memref<18x18x4xf32, #tpu.memory_space<vmem>>, vector<18x1x4xf32>
    tpu.vector_store %arg4[%c0_12, %c17_13, %c0_14], %3 {strides = array<i32>} : memref<18x18x4xf32, #tpu.memory_space<vmem>>, vector<18x1x4xf32>,
    %8 = arith.mulf %1, %1 : vector<16x16x4xf32>
    %c1 = arith.constant 1 : index
    %c1_15 = arith.constant 1 : index
    %c0_16 = arith.constant 0 : index
    %9 = vector.load %arg4[%c1, %c1_15, %c0_16] : memref<18x18x4xf32, #tpu.memory_space<vmem>>, vector<16x16x4xf32>
    tpu.vector_store %arg4[%c1, %c1_15, %c0_16], %8 {strides = array<i32>} : memref<18x18x4xf32, #tpu.memory_space<vmem>>, vector<16x16x4xf32>,
    %cst_17 = arith.constant 0.000000e+00 : f32
    %10 = vector.broadcast %cst_17 : f32 to vector<8x8x4xf32>
    %c0_18 = arith.constant 0 : index
    %c0_19 = arith.constant 0 : index
    %c0_20 = arith.constant 0 : index
    %11 = tpu.strided_load %arg4[%c0_18, %c0_19, %c0_20] {strides = array<i32: 2, 2, 1>} : memref<18x18x4xf32, #tpu.memory_space<vmem>>, vector<8x8x4xf32>
    %cst_21 = arith.constant 6.250000e-02 : f32
    %12 = vector.broadcast %cst_21 : f32 to vector<8x8x4xf32>
    %13 = arith.mulf %12, %11 : vector<8x8x4xf32>
    %14 = arith.addf %10, %13 : vector<8x8x4xf32>
    %c0_22 = arith.constant 0 : index
    %c1_23 = arith.constant 1 : index
    %c0_24 = arith.constant 0 : index
    %15 = tpu.strided_load %arg4[%c0_22, %c1_23, %c0_24] {strides = array<i32: 2, 2, 1>} : memref<18x18x4xf32, #tpu.memory_space<vmem>>, vector<8x8x4xf32>
    %cst_25 = arith.constant 1.250000e-01 : f32
    %16 = vector.broadcast %cst_25 : f32 to vector<8x8x4xf32>
    %17 = arith.mulf %16, %15 : vector<8x8x4xf32>
    %18 = arith.addf %14, %17 : vector<8x8x4xf32>
    %c0_26 = arith.constant 0 : index
    %c2 = arith.constant 2 : index
    %c0_27 = arith.constant 0 : index
    %19 = tpu.strided_load %arg4[%c0_26, %c2, %c0_27] {strides = array<i32: 2, 2, 1>} : memref<18x18x4xf32, #tpu.memory_space<vmem>>, vector<8x8x4xf32>
    %cst_28 = arith.constant 6.250000e-02 : f32
    %20 = vector.broadcast %cst_28 : f32 to vector<8x8x4xf32>
    %21 = arith.mulf %20, %19 : vector<8x8x4xf32>
    %22 = arith.addf %18, %21 : vector<8x8x4xf32>
    %c1_29 = arith.constant 1 : index
    %c0_30 = arith.constant 0 : index
    %c0_31 = arith.constant 0 : index
    %23 = tpu.strided_load %arg4[%c1_29, %c0_30, %c0_31] {strides = array<i32: 2, 2, 1>} : memref<18x18x4xf32, #tpu.memory_space<vmem>>, vector<8x8x4xf32>
    %cst_32 = arith.constant 1.250000e-01 : f32
    %24 = vector.broadcast %cst_32 : f32 to vector<8x8x4xf32>
    %25 = arith.mulf %24, %23 : vector<8x8x4xf32>
    %26 = arith.addf %22, %25 : vector<8x8x4xf32>
    %c1_33 = arith.constant 1 : index
    %c1_34 = arith.constant 1 : index
    %c0_35 = arith.constant 0 : index
    %27 = tpu.strided_load %arg4[%c1_33, %c1_34, %c0_35] {strides = array<i32: 2, 2, 1>} : memref<18x18x4xf32, #tpu.memory_space<vmem>>, vector<8x8x4xf32>
    %cst_36 = arith.constant 2.500000e-01 : f32
    %28 = vector.broadcast %cst_36 : f32 to vector<8x8x4xf32>
    %29 = arith.mulf %28, %27 : vector<8x8x4xf32>
    %30 = arith.addf %26, %29 : vector<8x8x4xf32>
    %c1_37 = arith.constant 1 : index
    %c2_38 = arith.constant 2 : index
    %c0_39 = arith.constant 0 : index
    %31 = tpu.strided_load %arg4[%c1_37, %c2_38, %c0_39] {strides = array<i32: 2, 2, 1>} : memref<18x18x4xf32, #tpu.memory_space<vmem>>, vector<8x8x4xf32>
    %cst_40 = arith.constant 1.250000e-01 : f32
    %32 = vector.broadcast %cst_40 : f32 to vector<8x8x4xf32>
    %33 = arith.mulf %32, %31 : vector<8x8x4xf32>
    %34 = arith.addf %30, %33 : vector<8x8x4xf32>
    %c2_41 = arith.constant 2 : index
    %c0_42 = arith.constant 0 : index
    %c0_43 = arith.constant 0 : index
    %35 = tpu.strided_load %arg4[%c2_41, %c0_42, %c0_43] {strides = array<i32: 2, 2, 1>} : memref<18x18x4xf32, #tpu.memory_space<vmem>>, vector<8x8x4xf32>
    %cst_44 = arith.constant 6.250000e-02 : f32
    %36 = vector.broadcast %cst_44 : f32 to vector<8x8x4xf32>
    %37 = arith.mulf %36, %35 : vector<8x8x4xf32>
    %38 = arith.addf %34, %37 : vector<8x8x4xf32>
    %c2_45 = arith.constant 2 : index
    %c1_46 = arith.constant 1 : index
    %c0_47 = arith.constant 0 : index
    %39 = tpu.strided_load %arg4[%c2_45, %c1_46, %c0_47] {strides = array<i32: 2, 2, 1>} : memref<18x18x4xf32, #tpu.memory_space<vmem>>, vector<8x8x4xf32>
    %cst_48 = arith.constant 1.250000e-01 : f32
    %40 = vector.broadcast %cst_48 : f32 to vector<8x8x4xf32>
    %41 = arith.mulf %40, %39 : vector<8x8x4xf32>
    %42 = arith.addf %38, %41 : vector<8x8x4xf32>
    %c2_49 = arith.constant 2 : index
    %c2_50 = arith.constant 2 : index
    %c0_51 = arith.constant 0 : index
    %43 = tpu.strided_load %arg4[%c2_49, %c2_50, %c0_51] {strides = array<i32: 2, 2, 1>} : memref<18x18x4xf32, #tpu.memory_space<vmem>>, vector<8x8x4xf32>
    %cst_52 = arith.constant 6.250000e-02 : f32
    %44 = vector.broadcast %cst_52 : f32 to vector<8x8x4xf32>
    %45 = arith.mulf %44, %43 : vector<8x8x4xf32>
    %46 = arith.addf %42, %45 : vector<8x8x4xf32>
    %cst_53 = arith.constant 9.99999996E-13 : f32
    %47 = vector.broadcast %cst_53 : f32 to vector<8x8x4xf32>
    %48 = arith.addf %46, %47 : vector<8x8x4xf32>
    %49 = math.sqrt %48 : vector<8x8x4xf32>
    %c0_54 = arith.constant 0 : index
    %c0_55 = arith.constant 0 : index
    %c0_56 = arith.constant 0 : index
    %c0_57 = arith.constant 0 : index
    %50 = vector.load %arg3[%c0_54, %c0_55, %c0_56, %c0_57] : memref<1x8x8x4xf32, #tpu.memory_space<vmem>>, vector<1x8x8x4xf32>
    %51 = vector.shape_cast %50 : vector<1x8x8x4xf32> to vector<8x8x4xf32>
    %52 = vector.shape_cast %49 : vector<8x8x4xf32> to vector<1x8x8x4xf32>
    tpu.vector_store %arg3[%c0_54, %c0_55, %c0_56, %c0_57], %52 {strides = array<i32>} : memref<1x8x8x4xf32, #tpu.memory_space<vmem>>, vector<1x8x8x4xf32>,
    return
  }
  func.func @transform_0(%arg0: i32, %arg1: i32) -> (i32, i32, i32, i32) {
    %c0_i32 = arith.constant 0 : i32
    %c0_i32_0 = arith.constant 0 : i32
    %c0_i32_1 = arith.constant 0 : i32
    return %arg0, %c0_i32, %c0_i32_0, %arg1 : i32, i32, i32, i32
  }
  func.func @transform_1(%arg0: i32, %arg1: i32) -> (i32, i32, i32, i32) {
    %c0_i32 = arith.constant 0 : i32
    %c0_i32_0 = arith.constant 0 : i32
    %c0_i32_1 = arith.constant 0 : i32
    return %arg0, %c0_i32, %c0_i32_0, %arg1 : i32, i32, i32, i32
  }
}

</mosaic_0001>

<llo_original>
// kernel: tpu_custom_call.1
$region0: #{tpu_custom_call.1}
  #allocation0 [shape = 'u32[]', space=smem, size = 0x4, offset = 0x4, fixed_abs, tag = 'smem constant byte address 0x4 - core index']
  #allocation1 [shape = 'u32[72,128]{1,0:T(1,128)}', space=vmem, size = 0x9000, scoped, tag = 'internal scratch']
  #allocation2 [shape = 'f32[18,18,4]{2,1,0:T(8,128)}', space=vmem, size = 0x36000, scoped, tag = 'scratch operand']
  %s0 = inlined_call_operand.vmem [shape: f32[2,16,16,4], index: 0, kind: input, shape index: {}]
  %s1 = inlined_call_operand.vmem [shape: f32[2,8,8,4], index: 1, kind: output, shape index: {}]
  %s2 = sld [smem:[#allocation0]]
  $region37: #{tpu_custom_call.1} parent=0
    _
  %s4 = ssub.s32 1, %s2
  %s5 = scalar_select 0, %s4, %s2
  loop: start=0, step=1, limit=4
  $region2: #{tpu_custom_call.1} parent=0 // loop_pre_header
    _
  $region3: #{tpu_custom_call.1} parent=0 // loop_header
    %s7 = sphi 0, %s11
    %p8 = scmp.ge.s32.totalorder %s7, 4
    %s14 = sphi 0, %s26
    %s15 = sphi 0, %s22
    %s16 = sphi 0, %s14
    %s17 = sphi 0, %s15
    %s18 = sphi 0, %s16
    %s19 = sphi 0, %s17
    %s31 = sphi 0, %s33
    %s34 = sphi 0, %s31
    %s35 = sphi 0, %s34
    %s51 = sphi 0, %s35
    %s59 = sphi 0, %s61
    %s62 = sphi 0, %s59
    %s63 = sphi 0, %s62
    %s79 = sphi 0, %s63
  $region4: #{tpu_custom_call.1} parent=0 // loop_header_branch
    %10 = sbr.rel (%p8) target = $region8
  $region5: #{tpu_custom_call.1} parent=0 // loop_body
    %s12 = ssub.s32 %s7, 1
    %s13 = ssub.s32 %s7, 2
    %s20 = sadd.s32 1, %s15
    %p21 = scmp.ge.s32.totalorder %s20, 1
    %s22 = scalar_select %p21, 0, %s20
    %s23 = sadd.s32 1, %s14
    %s24 = scalar_select %p21, %s23, %s14
    %p25 = scmp.ge.s32.totalorder %s24, 2
    %s26 = scalar_select %p25, 0, %s24
    %s27 = ssub.s32 %s14, %s26
    %s28 = ssub.s32 %s15, %s22
    %s29 = sor.u32 %s27, %s28
    %p30 = scmp.eq.s32.totalorder %s29, 0
    %s32 = sadd.s32 %s31, 1
    %s33 = scalar_select %p30, %s31, %s32
    %p36 = pneg %p30
    %p37 = scmp.eq.s32.totalorder %s7, 1
    %p38 = por %p36, %p37
    %p39 = scmp.ne.s32.totalorder %s31, %s34
    %p40 = scmp.eq.s32.totalorder %s7, 0
    %p41 = por %p39, %p40
    %p42 = scmp.ne.s32.totalorder %s31, %s34
    %p43 = scmp.eq.s32.totalorder %s12, 1
    %p44 = por %p42, %p43
    %p45 = scmp.ne.s32.totalorder %s34, %s35
    %p46 = scmp.eq.s32.totalorder %s12, 0
    %p47 = por %p45, %p46
    %p48 = scmp.ne.s32.totalorder %s34, %s35
    %p49 = scmp.eq.s32.totalorder %s13, 1
    %p50 = por %p48, %p49
    %p52 = scmp.ne.s32.totalorder %s35, %s51
    %p53 = scmp.eq.s32.totalorder %s13, 0
    %p54 = por %p52, %p53
    %s55 = ssub.s32 %s14, %s26
    %s56 = ssub.s32 %s15, %s22
    %s57 = sor.u32 %s55, %s56
    %p58 = scmp.eq.s32.totalorder %s57, 0
    %s60 = sadd.s32 %s59, 1
    %s61 = scalar_select %p58, %s59, %s60
    %p64 = pneg %p58
    %p65 = scmp.eq.s32.totalorder %s7, 1
    %p66 = por %p64, %p65
    %p67 = scmp.ne.s32.totalorder %s59, %s62
    %p68 = scmp.eq.s32.totalorder %s7, 0
    %p69 = por %p67, %p68
    %p70 = scmp.ne.s32.totalorder %s59, %s62
    %p71 = scmp.eq.s32.totalorder %s12, 1
    %p72 = por %p70, %p71
    %p73 = scmp.ne.s32.totalorder %s62, %s63
    %p74 = scmp.eq.s32.totalorder %s12, 0
    %p75 = por %p73, %p74
    %p76 = scmp.ne.s32.totalorder %s62, %s63
    %p77 = scmp.eq.s32.totalorder %s13, 1
    %p78 = por %p76, %p77
    %p80 = scmp.ne.s32.totalorder %s63, %s79
    %p81 = scmp.eq.s32.totalorder %s13, 0
    %p82 = por %p80, %p81
    %p83 = scmp.le.s32.totalorder 1, %s7
    %p84 = scmp.lt.s32.totalorder %s7, 3
    %p85 = pnand %p83, %p84
    %p86 = pneg %p85
    // Predicated region
    $region9: #{tpu_custom_call.1} parent=5 // pred_check
      _
    $region10: #{tpu_custom_call.1} parent=5 // pred_check_branch
      %88 = sbr.rel (%p85) target = $region12
    $region11: #{tpu_custom_call.1} parent=5 // pred_region
      %s89 = ssub.s32 %s7, 1
    $region12: #{tpu_custom_call.1} parent=5 // pred_fallthru
      _
    %p90 = scmp.lt.s32.totalorder %s7, 2
    // Predicated region
    $region13: #{tpu_custom_call.1} parent=5 // pred_check
      %p91 = pneg %p90
    $region14: #{tpu_custom_call.1} parent=5 // pred_check_branch
      %93 = sbr.rel (%p91) target = $region16
    $region15: #{tpu_custom_call.1} parent=5 // pred_region
      // Predicated region
      $region17: #{tpu_custom_call.1} parent=15 // pred_check
        %p94 = pneg %p41
      $region18: #{tpu_custom_call.1} parent=15 // pred_check_branch
        %96 = sbr.rel (%p94) target = $region20
      $region19: #{tpu_custom_call.1} parent=15 // pred_region
        %p97 = scmp.lt.s32.totalorder %s14, 1
        %s98 = scalar_select %p97, %s14, 1
        %p99 = scmp.lt.s32.totalorder %s15, 0
        %s100 = scalar_select %p99, %s15, 0
        %s101 = smul.addr %s98, 32
        %s102 = sadd.s32 %s100, %s101
        %s103 = smul.addr %s102, 8
        %s104 = scalar_lea.vmem %s0, %s103
      $region20: #{tpu_custom_call.1} parent=15 // pred_fallthru
        _
    $region16: #{tpu_custom_call.1} parent=5 // pred_fallthru
      _
    %p105 = scmp.le.s32.totalorder 1, %s7
    %p106 = scmp.lt.s32.totalorder %s7, 3
    %p107 = pnand %p105, %p106
    %p108 = pneg %p107
    // Predicated region
    $region21: #{tpu_custom_call.1} parent=5 // pred_check
      _
    $region22: #{tpu_custom_call.1} parent=5 // pred_check_branch
      %110 = sbr.rel (%p107) target = $region24
    $region23: #{tpu_custom_call.1} parent=5 // pred_region
      %s111 = ssub.s32 %s7, 1
      %p112 = scmp.lt.s32.totalorder %s16, 1
      %s113 = scalar_select %p112, %s16, 1
      %p114 = scmp.lt.s32.totalorder %s17, 0
      %s115 = scalar_select %p114, %s17, 0
      %s116 = smul.addr %s113, 32
      %s117 = sadd.s32 %s115, %s116
      %s118 = smul.addr %s117, 8
      %s119 = scalar_lea.vmem %s0, %s118
      %p120 = pneg %p47
      %p121 = pneg %p44
      %p122 = pneg %p75
      %p123 = pneg %p72
      %p124 = scmp.lt.s32.totalorder %s16, 1
      %s125 = scalar_select %p124, %s16, 1
      %p126 = scmp.lt.s32.totalorder %s17, 0
      %s127 = scalar_select %p126, %s17, 0
      %s128 = smul.addr %s125, 8
      %s129 = sadd.s32 %s127, %s128
      %s130 = smul.addr %s129, 8
      %s131 = scalar_lea.vmem %s1, %s130
      %p132 = scmp.lt.s32.totalorder %s16, 1
      %s133 = scalar_select %p132, %s16, 1
      %p134 = scmp.lt.s32.totalorder %s17, 0
      %s135 = scalar_select %p134, %s17, 0
      %s136 = smul.addr %s133, 32
      %s137 = sadd.s32 %s135, %s136
      %s138 = smul.addr %s137, 8
      %s139 = scalar_lea.vmem %s0, %s138
      %p140 = scmp.lt.s32.totalorder %s16, 1
      %s141 = scalar_select %p140, %s16, 1
      %p142 = scmp.lt.s32.totalorder %s17, 0
      %s143 = scalar_select %p142, %s17, 0
      %s144 = smul.addr %s141, 8
      %s145 = sadd.s32 %s143, %s144
      %s146 = smul.addr %s145, 8
      %s147 = scalar_lea.vmem %s1, %s146
      %v148 = vld [vmem:[%s139] sm:$0xff]
      %v149 = vld [vmem:[%s139 + $0x8] sm:$0xff]
      %v150 = vld [vmem:[%s139 + $0x10] sm:$0xff]
      %v151 = vld [vmem:[%s139 + $0x18] sm:$0xff]
      %v152 = vld [vmem:[%s139 + $0x20] sm:$0xff]
      %v153 = vld [vmem:[%s139 + $0x28] sm:$0xff]
      %v154 = vld [vmem:[%s139 + $0x30] sm:$0xff]
      %v155 = vld [vmem:[%s139 + $0x38] sm:$0xff]
      %v156 = vld [vmem:[%s139 + $0x40] sm:$0xff]
      %v157 = vld [vmem:[%s139 + $0x48] sm:$0xff]
      %v158 = vld [vmem:[%s139 + $0x50] sm:$0xff]
      %v159 = vld [vmem:[%s139 + $0x58] sm:$0xff]
      %v160 = vld [vmem:[%s139 + $0x60] sm:$0xff]
      %v161 = vld [vmem:[%s139 + $0x68] sm:$0xff]
      %v162 = vld [vmem:[%s139 + $0x70] sm:$0xff]
      %v163 = vld [vmem:[%s139 + $0x78] sm:$0xff]
      %v164 = vld [vmem:[%s139 + $0x80] sm:$0xff]
      %v165 = vld [vmem:[%s139 + $0x88] sm:$0xff]
      %v166 = vld [vmem:[%s139 + $0x90] sm:$0xff]
      %v167 = vld [vmem:[%s139 + $0x98] sm:$0xff]
      %v168 = vld [vmem:[%s139 + $0xa0] sm:$0xff]
      %v169 = vld [vmem:[%s139 + $0xa8] sm:$0xff]
      %v170 = vld [vmem:[%s139 + $0xb0] sm:$0xff]
      %v171 = vld [vmem:[%s139 + $0xb8] sm:$0xff]
      %v172 = vld [vmem:[%s139 + $0xc0] sm:$0xff]
      %v173 = vld [vmem:[%s139 + $0xc8] sm:$0xff]
      %v174 = vld [vmem:[%s139 + $0xd0] sm:$0xff]
      %v175 = vld [vmem:[%s139 + $0xd8] sm:$0xff]
      %v176 = vld [vmem:[%s139 + $0xe0] sm:$0xff]
      %v177 = vld [vmem:[%s139 + $0xe8] sm:$0xff]
      %v178 = vld [vmem:[%s139 + $0xf0] sm:$0xff]
      %v179 = vld [vmem:[%s139 + $0xf8] sm:$0xff]
      %vm180 = vcmask 31744
      %181 = vst.msk [vmem:[#allocation2] sm:$0xff] %vm180, 0.0
      %182 = vst.msk [vmem:[#allocation2 + $0x8] sm:$0xff] %vm180, 0.0
      %vm183 = vcmask 25600
      %184 = vst.msk [vmem:[#allocation2 + $0x10] sm:$0x3] %vm183, 0.0
      %s185 = scalar_lea.vmem [#allocation2], 408
      %186 = vst.msk [vmem:[%s185] sm:$0xff] %vm180, 0.0
      %187 = vst.msk [vmem:[%s185 + $0x8] sm:$0xff] %vm180, 0.0
      %188 = vst.msk [vmem:[%s185 + $0x10] sm:$0x3] %vm183, 0.0
      %vm189 = vcmask 24576
      %190 = vst.msk [vmem:[#allocation2] sm:$0x1] %vm189, 0.0
      %191 = vst.msk [vmem:[#allocation2 + $0x18] sm:$0x1] %vm189, 0.0
      %192 = vst.msk [vmem:[#allocation2 + $0x30] sm:$0x1] %vm189, 0.0
      %193 = vst.msk [vmem:[#allocation2 + $0x48] sm:$0x1] %vm189, 0.0
      %194 = vst.msk [vmem:[#allocation2 + $0x60] sm:$0x1] %vm189, 0.0
      %195 = vst.msk [vmem:[#allocation2 + $0x78] sm:$0x1] %vm189, 0.0
      %196 = vst.msk [vmem:[#allocation2 + $0x90] sm:$0x1] %vm189, 0.0
      %197 = vst.msk [vmem:[#allocation2 + $0xa8] sm:$0x1] %vm189, 0.0
      %198 = vst.msk [vmem:[#allocation2 + $0xc0] sm:$0x1] %vm189, 0.0
      %199 = vst.msk [vmem:[#allocation2 + $0xd8] sm:$0x1] %vm189, 0.0
      %200 = vst.msk [vmem:[#allocation2 + $0xf0] sm:$0x1] %vm189, 0.0
      %201 = vst.msk [vmem:[#allocation2 + $0x108] sm:$0x1] %vm189, 0.0
      %202 = vst.msk [vmem:[#allocation2 + $0x120] sm:$0x1] %vm189, 0.0
      %203 = vst.msk [vmem:[#allocation2 + $0x138] sm:$0x1] %vm189, 0.0
      %204 = vst.msk [vmem:[#allocation2 + $0x150] sm:$0x1] %vm189, 0.0
      %205 = vst.msk [vmem:[#allocation2 + $0x168] sm:$0x1] %vm189, 0.0
      %206 = vst.msk [vmem:[#allocation2 + $0x180] sm:$0x1] %vm189, 0.0
      %207 = vst.msk [vmem:[#allocation2 + $0x198] sm:$0x1] %vm189, 0.0
      %208 = vst.msk [vmem:[#allocation2 + $0x11] sm:$0x1] %vm189, 0.0
      %209 = vst.msk [vmem:[#allocation2 + $0x29] sm:$0x1] %vm189, 0.0
      %210 = vst.msk [vmem:[#allocation2 + $0x41] sm:$0x1] %vm189, 0.0
      %211 = vst.msk [vmem:[#allocation2 + $0x59] sm:$0x1] %vm189, 0.0
      %212 = vst.msk [vmem:[#allocation2 + $0x71] sm:$0x1] %vm189, 0.0
      %213 = vst.msk [vmem:[#allocation2 + $0x89] sm:$0x1] %vm189, 0.0
      %214 = vst.msk [vmem:[#allocation2 + $0xa1] sm:$0x1] %vm189, 0.0
      %215 = vst.msk [vmem:[#allocation2 + $0xb9] sm:$0x1] %vm189, 0.0
      %216 = vst.msk [vmem:[#allocation2 + $0xd1] sm:$0x1] %vm189, 0.0
      %217 = vst.msk [vmem:[#allocation2 + $0xe9] sm:$0x1] %vm189, 0.0
      %218 = vst.msk [vmem:[#allocation2 + $0x101] sm:$0x1] %vm189, 0.0
      %219 = vst.msk [vmem:[#allocation2 + $0x119] sm:$0x1] %vm189, 0.0
      %220 = vst.msk [vmem:[#allocation2 + $0x131] sm:$0x1] %vm189, 0.0
      %221 = vst.msk [vmem:[#allocation2 + $0x149] sm:$0x1] %vm189, 0.0
      %222 = vst.msk [vmem:[#allocation2 + $0x161] sm:$0x1] %vm189, 0.0
      %223 = vst.msk [vmem:[#allocation2 + $0x179] sm:$0x1] %vm189, 0.0
      %224 = vst.msk [vmem:[#allocation2 + $0x191] sm:$0x1] %vm189, 0.0
      %225 = vst.msk [vmem:[#allocation2 + $0x1a9] sm:$0x1] %vm189, 0.0
      %v226 = vmul.f32 %v148, %v148
      %v227 = vmul.f32 %v149, %v149
      %v228 = vmul.f32 %v150, %v150
      %v229 = vmul.f32 %v151, %v151
      %v230 = vmul.f32 %v152, %v152
      %v231 = vmul.f32 %v153, %v153
      %v232 = vmul.f32 %v154, %v154
      %v233 = vmul.f32 %v155, %v155
      %v234 = vmul.f32 %v156, %v156
      %v235 = vmul.f32 %v157, %v157
      %v236 = vmul.f32 %v158, %v158
      %v237 = vmul.f32 %v159, %v159
      %v238 = vmul.f32 %v160, %v160
      %v239 = vmul.f32 %v161, %v161
      %v240 = vmul.f32 %v162, %v162
      %v241 = vmul.f32 %v163, %v163
      %v242 = vmul.f32 %v164, %v164
      %v243 = vmul.f32 %v165, %v165
      %v244 = vmul.f32 %v166, %v166
      %v245 = vmul.f32 %v167, %v167
      %v246 = vmul.f32 %v168, %v168
      %v247 = vmul.f32 %v169, %v169
      %v248 = vmul.f32 %v170, %v170
      %v249 = vmul.f32 %v171, %v171
      %v250 = vmul.f32 %v172, %v172
      %v251 = vmul.f32 %v173, %v173
      %v252 = vmul.f32 %v174, %v174
      %v253 = vmul.f32 %v175, %v175
      %v254 = vmul.f32 %v176, %v176
      %v255 = vmul.f32 %v177, %v177
      %v256 = vmul.f32 %v178, %v178
      %v257 = vmul.f32 %v179, %v179
      %s258 = scalar_lea.vmem [#allocation2], 24
      %259 = vst.msk [vmem:[%s258 + $0x1] sm:$0xff] %vm180, %v226
      %260 = vst.msk [vmem:[%s258 + $0x9] sm:$0xff] %vm180, %v227
      %261 = vst.msk [vmem:[%s258 + $0x19] sm:$0xff] %vm180, %v228
      %262 = vst.msk [vmem:[%s258 + $0x21] sm:$0xff] %vm180, %v229
      %263 = vst.msk [vmem:[%s258 + $0x31] sm:$0xff] %vm180, %v230
      %264 = vst.msk [vmem:[%s258 + $0x39] sm:$0xff] %vm180, %v231
      %265 = vst.msk [vmem:[%s258 + $0x49] sm:$0xff] %vm180, %v232
      %266 = vst.msk [vmem:[%s258 + $0x51] sm:$0xff] %vm180, %v233
      %267 = vst.msk [vmem:[%s258 + $0x61] sm:$0xff] %vm180, %v234
      %268 = vst.msk [vmem:[%s258 + $0x69] sm:$0xff] %vm180, %v235
      %269 = vst.msk [vmem:[%s258 + $0x79] sm:$0xff] %vm180, %v236
      %270 = vst.msk [vmem:[%s258 + $0x81] sm:$0xff] %vm180, %v237
      %271 = vst.msk [vmem:[%s258 + $0x91] sm:$0xff] %vm180, %v238
      %272 = vst.msk [vmem:[%s258 + $0x99] sm:$0xff] %vm180, %v239
      %273 = vst.msk [vmem:[%s258 + $0xa9] sm:$0xff] %vm180, %v240
      %274 = vst.msk [vmem:[%s258 + $0xb1] sm:$0xff] %vm180, %v241
      %275 = vst.msk [vmem:[%s258 + $0xc1] sm:$0xff] %vm180, %v242
      %276 = vst.msk [vmem:[%s258 + $0xc9] sm:$0xff] %vm180, %v243
      %277 = vst.msk [vmem:[%s258 + $0xd9] sm:$0xff] %vm180, %v244
      %278 = vst.msk [vmem:[%s258 + $0xe1] sm:$0xff] %vm180, %v245
      %279 = vst.msk [vmem:[%s258 + $0xf1] sm:$0xff] %vm180, %v246
      %280 = vst.msk [vmem:[%s258 + $0xf9] sm:$0xff] %vm180, %v247
      %281 = vst.msk [vmem:[%s258 + $0x109] sm:$0xff] %vm180, %v248
      %282 = vst.msk [vmem:[%s258 + $0x111] sm:$0xff] %vm180, %v249
      %283 = vst.msk [vmem:[%s258 + $0x121] sm:$0xff] %vm180, %v250
      %284 = vst.msk [vmem:[%s258 + $0x129] sm:$0xff] %vm180, %v251
      %285 = vst.msk [vmem:[%s258 + $0x139] sm:$0xff] %vm180, %v252
      %286 = vst.msk [vmem:[%s258 + $0x141] sm:$0xff] %vm180, %v253
      %287 = vst.msk [vmem:[%s258 + $0x151] sm:$0xff] %vm180, %v254
      %288 = vst.msk [vmem:[%s258 + $0x159] sm:$0xff] %vm180, %v255
      %289 = vst.msk [vmem:[%s258 + $0x169] sm:$0xff] %vm180, %v256
      %290 = vst.msk [vmem:[%s258 + $0x171] sm:$0xff] %vm180, %v257
      %v291 = vld [vmem:[#allocation2] ss:$2 sm:$0xff]
      %s292 = scalar_lea.vmem [#allocation2], 48
      %v293 = vld [vmem:[%s292] ss:$2 sm:$0xff]
      %s294 = scalar_lea.vmem [#allocation2], 96
      %v295 = vld [vmem:[%s294] ss:$2 sm:$0xff]
      %s296 = scalar_lea.vmem [#allocation2], 144
      %v297 = vld [vmem:[%s296] ss:$2 sm:$0xff]
      %s298 = scalar_lea.vmem [#allocation2], 192
      %v299 = vld [vmem:[%s298] ss:$2 sm:$0xff]
      %s300 = scalar_lea.vmem [#allocation2], 240
      %v301 = vld [vmem:[%s300] ss:$2 sm:$0xff]
      %s302 = scalar_lea.vmem [#allocation2], 288
      %v303 = vld [vmem:[%s302] ss:$2 sm:$0xff]
      %s304 = scalar_lea.vmem [#allocation2], 336
      %v305 = vld [vmem:[%s304] ss:$2 sm:$0xff]
      %v306 = vmul.f32 %v291, 0.0625
      %v307 = vmul.f32 %v293, 0.0625
      %v308 = vmul.f32 %v295, 0.0625
      %v309 = vmul.f32 %v297, 0.0625
      %v310 = vmul.f32 %v299, 0.0625
      %v311 = vmul.f32 %v301, 0.0625
      %v312 = vmul.f32 %v303, 0.0625
      %v313 = vmul.f32 %v305, 0.0625
      %v314 = vadd.f32 %v306, 0.0
      %v315 = vadd.f32 %v307, 0.0
      %v316 = vadd.f32 %v308, 0.0
      %v317 = vadd.f32 %v309, 0.0
      %v318 = vadd.f32 %v310, 0.0
      %v319 = vadd.f32 %v311, 0.0
      %v320 = vadd.f32 %v312, 0.0
      %v321 = vadd.f32 %v313, 0.0
      %s322 = scalar_lea.vmem [#allocation2], 1
      %v323 = vld [vmem:[%s322] ss:$2 sm:$0xff]
      %s324 = scalar_lea.vmem [#allocation2], 49
      %v325 = vld [vmem:[%s324] ss:$2 sm:$0xff]
      %s326 = scalar_lea.vmem [#allocation2], 97
      %v327 = vld [vmem:[%s326] ss:$2 sm:$0xff]
      %s328 = scalar_lea.vmem [#allocation2], 145
      %v329 = vld [vmem:[%s328] ss:$2 sm:$0xff]
      %s330 = scalar_lea.vmem [#allocation2], 193
      %v331 = vld [vmem:[%s330] ss:$2 sm:$0xff]
      %s332 = scalar_lea.vmem [#allocation2], 241
      %v333 = vld [vmem:[%s332] ss:$2 sm:$0xff]
      %s334 = scalar_lea.vmem [#allocation2], 289
      %v335 = vld [vmem:[%s334] ss:$2 sm:$0xff]
      %s336 = scalar_lea.vmem [#allocation2], 337
      %v337 = vld [vmem:[%s336] ss:$2 sm:$0xff]
      %v338 = vmul.f32 %v323, 0.125
      %v339 = vmul.f32 %v325, 0.125
      %v340 = vmul.f32 %v327, 0.125
      %v341 = vmul.f32 %v329, 0.125
      %v342 = vmul.f32 %v331, 0.125
      %v343 = vmul.f32 %v333, 0.125
      %v344 = vmul.f32 %v335, 0.125
      %v345 = vmul.f32 %v337, 0.125
      %v346 = vadd.f32 %v314, %v338
      %v347 = vadd.f32 %v315, %v339
      %v348 = vadd.f32 %v316, %v340
      %v349 = vadd.f32 %v317, %v341
      %v350 = vadd.f32 %v318, %v342
      %v351 = vadd.f32 %v319, %v343
      %v352 = vadd.f32 %v320, %v344
      %v353 = vadd.f32 %v321, %v345
      %s354 = scalar_lea.vmem [#allocation2], 2
      %v355 = vld [vmem:[%s354] ss:$2 sm:$0xff]
      %s356 = scalar_lea.vmem [#allocation2], 50
      %v357 = vld [vmem:[%s356] ss:$2 sm:$0xff]
      %s358 = scalar_lea.vmem [#allocation2], 98
      %v359 = vld [vmem:[%s358] ss:$2 sm:$0xff]
      %s360 = scalar_lea.vmem [#allocation2], 146
      %v361 = vld [vmem:[%s360] ss:$2 sm:$0xff]
      %s362 = scalar_lea.vmem [#allocation2], 194
      %v363 = vld [vmem:[%s362] ss:$2 sm:$0xff]
      %s364 = scalar_lea.vmem [#allocation2], 242
      %v365 = vld [vmem:[%s364] ss:$2 sm:$0xff]
      %s366 = scalar_lea.vmem [#allocation2], 290
      %v367 = vld [vmem:[%s366] ss:$2 sm:$0xff]
      %s368 = scalar_lea.vmem [#allocation2], 338
      %v369 = vld [vmem:[%s368] ss:$2 sm:$0xff]
      %v370 = vmul.f32 %v355, 0.0625
      %v371 = vmul.f32 %v357, 0.0625
      %v372 = vmul.f32 %v359, 0.0625
      %v373 = vmul.f32 %v361, 0.0625
      %v374 = vmul.f32 %v363, 0.0625
      %v375 = vmul.f32 %v365, 0.0625
      %v376 = vmul.f32 %v367, 0.0625
      %v377 = vmul.f32 %v369, 0.0625
      %v378 = vadd.f32 %v346, %v370
      %v379 = vadd.f32 %v347, %v371
      %v380 = vadd.f32 %v348, %v372
      %v381 = vadd.f32 %v349, %v373
      %v382 = vadd.f32 %v350, %v374
      %v383 = vadd.f32 %v351, %v375
      %v384 = vadd.f32 %v352, %v376
      %v385 = vadd.f32 %v353, %v377
      %v386 = vld [vmem:[%s258] ss:$2 sm:$0xff]
      %s387 = scalar_lea.vmem %s258, 48 [#allocation2]
      %v388 = vld [vmem:[%s387] ss:$2 sm:$0xff]
      %s389 = scalar_lea.vmem %s258, 96 [#allocation2]
      %v390 = vld [vmem:[%s389] ss:$2 sm:$0xff]
      %s391 = scalar_lea.vmem %s258, 144 [#allocation2]
      %v392 = vld [vmem:[%s391] ss:$2 sm:$0xff]
      %s393 = scalar_lea.vmem %s258, 192 [#allocation2]
      %v394 = vld [vmem:[%s393] ss:$2 sm:$0xff]
      %s395 = scalar_lea.vmem %s258, 240 [#allocation2]
      %v396 = vld [vmem:[%s395] ss:$2 sm:$0xff]
      %s397 = scalar_lea.vmem %s258, 288 [#allocation2]
      %v398 = vld [vmem:[%s397] ss:$2 sm:$0xff]
      %s399 = scalar_lea.vmem %s258, 336 [#allocation2]
      %v400 = vld [vmem:[%s399] ss:$2 sm:$0xff]
      %v401 = vmul.f32 %v386, 0.125
      %v402 = vmul.f32 %v388, 0.125
      %v403 = vmul.f32 %v390, 0.125
      %v404 = vmul.f32 %v392, 0.125
      %v405 = vmul.f32 %v394, 0.125
      %v406 = vmul.f32 %v396, 0.125
      %v407 = vmul.f32 %v398, 0.125
      %v408 = vmul.f32 %v400, 0.125
      %v409 = vadd.f32 %v378, %v401
      %v410 = vadd.f32 %v379, %v402
      %v411 = vadd.f32 %v380, %v403
      %v412 = vadd.f32 %v381, %v404
      %v413 = vadd.f32 %v382, %v405
      %v414 = vadd.f32 %v383, %v406
      %v415 = vadd.f32 %v384, %v407
      %v416 = vadd.f32 %v385, %v408
      %s417 = scalar_lea.vmem %s258, 1 [#allocation2]
      %v418 = vld [vmem:[%s417] ss:$2 sm:$0xff]
      %s419 = scalar_lea.vmem %s258, 49 [#allocation2]
      %v420 = vld [vmem:[%s419] ss:$2 sm:$0xff]
      %s421 = scalar_lea.vmem %s258, 97 [#allocation2]
      %v422 = vld [vmem:[%s421] ss:$2 sm:$0xff]
      %s423 = scalar_lea.vmem %s258, 145 [#allocation2]
      %v424 = vld [vmem:[%s423] ss:$2 sm:$0xff]
      %s425 = scalar_lea.vmem %s258, 193 [#allocation2]
      %v426 = vld [vmem:[%s425] ss:$2 sm:$0xff]
      %s427 = scalar_lea.vmem %s258, 241 [#allocation2]
      %v428 = vld [vmem:[%s427] ss:$2 sm:$0xff]
      %s429 = scalar_lea.vmem %s258, 289 [#allocation2]
      %v430 = vld [vmem:[%s429] ss:$2 sm:$0xff]
      %s431 = scalar_lea.vmem %s258, 337 [#allocation2]
      %v432 = vld [vmem:[%s431] ss:$2 sm:$0xff]
      %v433 = vmul.f32 %v418, 0.25
      %v434 = vmul.f32 %v420, 0.25
      %v435 = vmul.f32 %v422, 0.25
      %v436 = vmul.f32 %v424, 0.25
      %v437 = vmul.f32 %v426, 0.25
      %v438 = vmul.f32 %v428, 0.25
      %v439 = vmul.f32 %v430, 0.25
      %v440 = vmul.f32 %v432, 0.25
      %v441 = vadd.f32 %v409, %v433
      %v442 = vadd.f32 %v410, %v434
      %v443 = vadd.f32 %v411, %v435
      %v444 = vadd.f32 %v412, %v436
      %v445 = vadd.f32 %v413, %v437
      %v446 = vadd.f32 %v414, %v438
      %v447 = vadd.f32 %v415, %v439
      %v448 = vadd.f32 %v416, %v440
      %s449 = scalar_lea.vmem %s258, 2 [#allocation2]
      %v450 = vld [vmem:[%s449] ss:$2 sm:$0xff]
      %s451 = scalar_lea.vmem %s258, 50 [#allocation2]
      %v452 = vld [vmem:[%s451] ss:$2 sm:$0xff]
      %s453 = scalar_lea.vmem %s258, 98 [#allocation2]
      %v454 = vld [vmem:[%s453] ss:$2 sm:$0xff]
      %s455 = scalar_lea.vmem %s258, 146 [#allocation2]
      %v456 = vld [vmem:[%s455] ss:$2 sm:$0xff]
      %s457 = scalar_lea.vmem %s258, 194 [#allocation2]
      %v458 = vld [vmem:[%s457] ss:$2 sm:$0xff]
      %s459 = scalar_lea.vmem %s258, 242 [#allocation2]
      %v460 = vld [vmem:[%s459] ss:$2 sm:$0xff]
      %s461 = scalar_lea.vmem %s258, 290 [#allocation2]
      %v462 = vld [vmem:[%s461] ss:$2 sm:$0xff]
      %s463 = scalar_lea.vmem %s258, 338 [#allocation2]
      %v464 = vld [vmem:[%s463] ss:$2 sm:$0xff]
      %v465 = vmul.f32 %v450, 0.125
      %v466 = vmul.f32 %v452, 0.125
      %v467 = vmul.f32 %v454, 0.125
      %v468 = vmul.f32 %v456, 0.125
      %v469 = vmul.f32 %v458, 0.125
      %v470 = vmul.f32 %v460, 0.125
      %v471 = vmul.f32 %v462, 0.125
      %v472 = vmul.f32 %v464, 0.125
      %v473 = vadd.f32 %v441, %v465
      %v474 = vadd.f32 %v442, %v466
      %v475 = vadd.f32 %v443, %v467
      %v476 = vadd.f32 %v444, %v468
      %v477 = vadd.f32 %v445, %v469
      %v478 = vadd.f32 %v446, %v470
      %v479 = vadd.f32 %v447, %v471
      %v480 = vadd.f32 %v448, %v472
      %s481 = scalar_lea.vmem [#allocation2], 48
      %v482 = vld [vmem:[%s481] ss:$2 sm:$0xff]
      %s483 = scalar_lea.vmem %s481, 48 [#allocation2]
      %v484 = vld [vmem:[%s483] ss:$2 sm:$0xff]
      %s485 = scalar_lea.vmem %s481, 96 [#allocation2]
      %v486 = vld [vmem:[%s485] ss:$2 sm:$0xff]
      %s487 = scalar_lea.vmem %s481, 144 [#allocation2]
      %v488 = vld [vmem:[%s487] ss:$2 sm:$0xff]
      %s489 = scalar_lea.vmem %s481, 192 [#allocation2]
      %v490 = vld [vmem:[%s489] ss:$2 sm:$0xff]
      %s491 = scalar_lea.vmem %s481, 240 [#allocation2]
      %v492 = vld [vmem:[%s491] ss:$2 sm:$0xff]
      %s493 = scalar_lea.vmem %s481, 288 [#allocation2]
      %v494 = vld [vmem:[%s493] ss:$2 sm:$0xff]
      %s495 = scalar_lea.vmem %s481, 336 [#allocation2]
      %v496 = vld [vmem:[%s495] ss:$2 sm:$0xff]
      %v497 = vmul.f32 %v482, 0.0625
      %v498 = vmul.f32 %v484, 0.0625
      %v499 = vmul.f32 %v486, 0.0625
      %v500 = vmul.f32 %v488, 0.0625
      %v501 = vmul.f32 %v490, 0.0625
      %v502 = vmul.f32 %v492, 0.0625
      %v503 = vmul.f32 %v494, 0.0625
      %v504 = vmul.f32 %v496, 0.0625
      %v505 = vadd.f32 %v473, %v497
      %v506 = vadd.f32 %v474, %v498
      %v507 = vadd.f32 %v475, %v499
      %v508 = vadd.f32 %v476, %v500
      %v509 = vadd.f32 %v477, %v501
      %v510 = vadd.f32 %v478, %v502
      %v511 = vadd.f32 %v479, %v503
      %v512 = vadd.f32 %v480, %v504
      %s513 = scalar_lea.vmem %s481, 1 [#allocation2]
      %v514 = vld [vmem:[%s513] ss:$2 sm:$0xff]
      %s515 = scalar_lea.vmem %s481, 49 [#allocation2]
      %v516 = vld [vmem:[%s515] ss:$2 sm:$0xff]
      %s517 = scalar_lea.vmem %s481, 97 [#allocation2]
      %v518 = vld [vmem:[%s517] ss:$2 sm:$0xff]
      %s519 = scalar_lea.vmem %s481, 145 [#allocation2]
      %v520 = vld [vmem:[%s519] ss:$2 sm:$0xff]
      %s521 = scalar_lea.vmem %s481, 193 [#allocation2]
      %v522 = vld [vmem:[%s521] ss:$2 sm:$0xff]
      %s523 = scalar_lea.vmem %s481, 241 [#allocation2]
      %v524 = vld [vmem:[%s523] ss:$2 sm:$0xff]
      %s525 = scalar_lea.vmem %s481, 289 [#allocation2]
      %v526 = vld [vmem:[%s525] ss:$2 sm:$0xff]
      %s527 = scalar_lea.vmem %s481, 337 [#allocation2]
      %v528 = vld [vmem:[%s527] ss:$2 sm:$0xff]
      %v529 = vmul.f32 %v514, 0.125
      %v530 = vmul.f32 %v516, 0.125
      %v531 = vmul.f32 %v518, 0.125
      %v532 = vmul.f32 %v520, 0.125
      %v533 = vmul.f32 %v522, 0.125
      %v534 = vmul.f32 %v524, 0.125
      %v535 = vmul.f32 %v526, 0.125
      %v536 = vmul.f32 %v528, 0.125
      %v537 = vadd.f32 %v505, %v529
      %v538 = vadd.f32 %v506, %v530
      %v539 = vadd.f32 %v507, %v531
      %v540 = vadd.f32 %v508, %v532
      %v541 = vadd.f32 %v509, %v533
      %v542 = vadd.f32 %v510, %v534
      %v543 = vadd.f32 %v511, %v535
      %v544 = vadd.f32 %v512, %v536
      %s545 = scalar_lea.vmem %s481, 2 [#allocation2]
      %v546 = vld [vmem:[%s545] ss:$2 sm:$0xff]
      %s547 = scalar_lea.vmem %s481, 50 [#allocation2]
      %v548 = vld [vmem:[%s547] ss:$2 sm:$0xff]
      %s549 = scalar_lea.vmem %s481, 98 [#allocation2]
      %v550 = vld [vmem:[%s549] ss:$2 sm:$0xff]
      %s551 = scalar_lea.vmem %s481, 146 [#allocation2]
      %v552 = vld [vmem:[%s551] ss:$2 sm:$0xff]
      %s553 = scalar_lea.vmem %s481, 194 [#allocation2]
      %v554 = vld [vmem:[%s553] ss:$2 sm:$0xff]
      %s555 = scalar_lea.vmem %s481, 242 [#allocation2]
      %v556 = vld [vmem:[%s555] ss:$2 sm:$0xff]
      %s557 = scalar_lea.vmem %s481, 290 [#allocation2]
      %v558 = vld [vmem:[%s557] ss:$2 sm:$0xff]
      %s559 = scalar_lea.vmem %s481, 338 [#allocation2]
      %v560 = vld [vmem:[%s559] ss:$2 sm:$0xff]
      %v561 = vmul.f32 %v546, 0.0625
      %v562 = vmul.f32 %v548, 0.0625
      %v563 = vmul.f32 %v550, 0.0625
      %v564 = vmul.f32 %v552, 0.0625
      %v565 = vmul.f32 %v554, 0.0625
      %v566 = vmul.f32 %v556, 0.0625
      %v567 = vmul.f32 %v558, 0.0625
      %v568 = vmul.f32 %v560, 0.0625
      %v569 = vadd.f32 %v537, %v561
      %v570 = vadd.f32 %v538, %v562
      %v571 = vadd.f32 %v539, %v563
      %v572 = vadd.f32 %v540, %v564
      %v573 = vadd.f32 %v541, %v565
      %v574 = vadd.f32 %v542, %v566
      %v575 = vadd.f32 %v543, %v567
      %v576 = vadd.f32 %v544, %v568
      %v577 = vadd.f32 %v569, 1e-12
      %v578 = vadd.f32 %v570, 1e-12
      %v579 = vadd.f32 %v571, 1e-12
      %v580 = vadd.f32 %v572, 1e-12
      %v581 = vadd.f32 %v573, 1e-12
      %v582 = vadd.f32 %v574, 1e-12
      %v583 = vadd.f32 %v575, 1e-12
      %v584 = vadd.f32 %v576, 1e-12
      %v585 = vrsqrt.pop %v577
      %v586 = vmul.f32 %v585, %v577
      %v587 = vmul.f32 %v586, %v585
      %v588 = vmul.f32 0.5, %v587
      %v589 = vsub.f32 1.5, %v588
      %v590 = vmul.f32 %v585, %v589
      %v591 = vmul.f32 %v577, %v590
      %vm592 = vcmp.eq.f32.partialorder %v577, inf
      %v593 = vsel %vm592, %v577, %v591
      %vm594 = vcmp.eq.f32.partialorder %v577, 0.0
      %v595 = vand.u32 %v577, 2147483648
      %v596 = vsel %vm594, %v595, %v593
      %v597 = vrsqrt.pop %v578
      %v598 = vmul.f32 %v597, %v578
      %v599 = vmul.f32 %v598, %v597
      %v600 = vmul.f32 0.5, %v599
      %v601 = vsub.f32 1.5, %v600
      %v602 = vmul.f32 %v597, %v601
      %v603 = vmul.f32 %v578, %v602
      %vm604 = vcmp.eq.f32.partialorder %v578, inf
      %v605 = vsel %vm604, %v578, %v603
      %vm606 = vcmp.eq.f32.partialorder %v578, 0.0
      %v607 = vand.u32 %v578, 2147483648
      %v608 = vsel %vm606, %v607, %v605
      %v609 = vrsqrt.pop %v579
      %v610 = vmul.f32 %v609, %v579
      %v611 = vmul.f32 %v610, %v609
      %v612 = vmul.f32 0.5, %v611
      %v613 = vsub.f32 1.5, %v612
      %v614 = vmul.f32 %v609, %v613
      %v615 = vmul.f32 %v579, %v614
      %vm616 = vcmp.eq.f32.partialorder %v579, inf
      %v617 = vsel %vm616, %v579, %v615
      %vm618 = vcmp.eq.f32.partialorder %v579, 0.0
      %v619 = vand.u32 %v579, 2147483648
      %v620 = vsel %vm618, %v619, %v617
      %v621 = vrsqrt.pop %v580
      %v622 = vmul.f32 %v621, %v580
      %v623 = vmul.f32 %v622, %v621
      %v624 = vmul.f32 0.5, %v623
      %v625 = vsub.f32 1.5, %v624
      %v626 = vmul.f32 %v621, %v625
      %v627 = vmul.f32 %v580, %v626
      %vm628 = vcmp.eq.f32.partialorder %v580, inf
      %v629 = vsel %vm628, %v580, %v627
      %vm630 = vcmp.eq.f32.partialorder %v580, 0.0
      %v631 = vand.u32 %v580, 2147483648
      %v632 = vsel %vm630, %v631, %v629
      %v633 = vrsqrt.pop %v581
      %v634 = vmul.f32 %v633, %v581
      %v635 = vmul.f32 %v634, %v633
      %v636 = vmul.f32 0.5, %v635
      %v637 = vsub.f32 1.5, %v636
      %v638 = vmul.f32 %v633, %v637
      %v639 = vmul.f32 %v581, %v638
      %vm640 = vcmp.eq.f32.partialorder %v581, inf
      %v641 = vsel %vm640, %v581, %v639
      %vm642 = vcmp.eq.f32.partialorder %v581, 0.0
      %v643 = vand.u32 %v581, 2147483648
      %v644 = vsel %vm642, %v643, %v641
      %v645 = vrsqrt.pop %v582
      %v646 = vmul.f32 %v645, %v582
      %v647 = vmul.f32 %v646, %v645
      %v648 = vmul.f32 0.5, %v647
      %v649 = vsub.f32 1.5, %v648
      %v650 = vmul.f32 %v645, %v649
      %v651 = vmul.f32 %v582, %v650
      %vm652 = vcmp.eq.f32.partialorder %v582, inf
      %v653 = vsel %vm652, %v582, %v651
      %vm654 = vcmp.eq.f32.partialorder %v582, 0.0
      %v655 = vand.u32 %v582, 2147483648
      %v656 = vsel %vm654, %v655, %v653
      %v657 = vrsqrt.pop %v583
      %v658 = vmul.f32 %v657, %v583
      %v659 = vmul.f32 %v658, %v657
      %v660 = vmul.f32 0.5, %v659
      %v661 = vsub.f32 1.5, %v660
      %v662 = vmul.f32 %v657, %v661
      %v663 = vmul.f32 %v583, %v662
      %vm664 = vcmp.eq.f32.partialorder %v583, inf
      %v665 = vsel %vm664, %v583, %v663
      %vm666 = vcmp.eq.f32.partialorder %v583, 0.0
      %v667 = vand.u32 %v583, 2147483648
      %v668 = vsel %vm666, %v667, %v665
      %v669 = vrsqrt.pop %v584
      %v670 = vmul.f32 %v669, %v584
      %v671 = vmul.f32 %v670, %v669
      %v672 = vmul.f32 0.5, %v671
      %v673 = vsub.f32 1.5, %v672
      %v674 = vmul.f32 %v669, %v673
      %v675 = vmul.f32 %v584, %v674
      %vm676 = vcmp.eq.f32.partialorder %v584, inf
      %v677 = vsel %vm676, %v584, %v675
      %vm678 = vcmp.eq.f32.partialorder %v584, 0.0
      %v679 = vand.u32 %v584, 2147483648
      %v680 = vsel %vm678, %v679, %v677
      %681 = vst.msk [vmem:[%s147] sm:$0xff] %vm180, %v596
      %682 = vst.msk [vmem:[%s147 + $0x8] sm:$0xff] %vm180, %v608
      %683 = vst.msk [vmem:[%s147 + $0x10] sm:$0xff] %vm180, %v620
      %684 = vst.msk [vmem:[%s147 + $0x18] sm:$0xff] %vm180, %v632
      %685 = vst.msk [vmem:[%s147 + $0x20] sm:$0xff] %vm180, %v644
      %686 = vst.msk [vmem:[%s147 + $0x28] sm:$0xff] %vm180, %v656
      %687 = vst.msk [vmem:[%s147 + $0x30] sm:$0xff] %vm180, %v668
      %688 = vst.msk [vmem:[%s147 + $0x38] sm:$0xff] %vm180, %v680
      %p689 = scmp.lt.s32.totalorder %s16, 1
      %s690 = scalar_select %p689, %s16, 1
      %p691 = scmp.lt.s32.totalorder %s17, 0
      %s692 = scalar_select %p691, %s17, 0
      %s693 = smul.addr %s690, 8
      %s694 = sadd.s32 %s692, %s693
      %s695 = smul.addr %s694, 8
      %s696 = scalar_lea.vmem %s1, %s695
      // Predicated region
      $region25: #{tpu_custom_call.1} parent=23 // pred_check
        %p697 = pneg %p72
      $region26: #{tpu_custom_call.1} parent=23 // pred_check_branch
        %699 = sbr.rel (%p697) target = $region28
      $region27: #{tpu_custom_call.1} parent=23 // pred_region
        _
      $region28: #{tpu_custom_call.1} parent=23 // pred_fallthru
        _
    $region24: #{tpu_custom_call.1} parent=5 // pred_fallthru
      _
    %p700 = scmp.le.s32.totalorder 2, %s7
    // Predicated region
    $region29: #{tpu_custom_call.1} parent=5 // pred_check
      %p701 = pneg %p700
    $region30: #{tpu_custom_call.1} parent=5 // pred_check_branch
      %703 = sbr.rel (%p701) target = $region32
    $region31: #{tpu_custom_call.1} parent=5 // pred_region
      %s704 = ssub.s32 %s7, 2
      // Predicated region
      $region33: #{tpu_custom_call.1} parent=31 // pred_check
        %p705 = pneg %p78
      $region34: #{tpu_custom_call.1} parent=31 // pred_check_branch
        %707 = sbr.rel (%p705) target = $region36
      $region35: #{tpu_custom_call.1} parent=31 // pred_region
        %p708 = scmp.lt.s32.totalorder %s18, 1
        %s709 = scalar_select %p708, %s18, 1
        %p710 = scmp.lt.s32.totalorder %s19, 0
        %s711 = scalar_select %p710, %s19, 0
        %s712 = smul.addr %s709, 8
        %s713 = sadd.s32 %s711, %s712
        %s714 = smul.addr %s713, 8
        %s715 = scalar_lea.vmem %s1, %s714
      $region36: #{tpu_custom_call.1} parent=31 // pred_fallthru
        _
    $region32: #{tpu_custom_call.1} parent=5 // pred_fallthru
      _
  $region6: #{tpu_custom_call.1} parent=0 // loop_footer
    %s11 = sadd.s32 1, %s7
  $region7: #{tpu_custom_call.1} parent=0 // loop_footer_branch
    %6 = sbr.rel target = $region3
  $region8: #{tpu_custom_call.1} parent=0 // loop_exit
    _

</llo_original>
